<compile_context>
chip_gen: v5e
topology: v5e:2x2
jax: 0.10.0
libtpu: 0.0.40
codegen_flags: <defaults>
</compile_context>

<pallas_src>
import jax
import jax.numpy as jnp
from jax import lax
from jax.experimental import pallas as pl
from jax.experimental.pallas import tpu as pltpu


def _round_up(x, m):
    return ((x + m - 1) // m) * m


# ----------------------------------------------------------------------------
# Kernel 1: fused backbone (3x3 s2 conv as matmul) + ReLU + 1x1 classifier.
# ----------------------------------------------------------------------------
def _fused_conv_cls_kernel(p_ref, wbb_ref, bbb_ref, wcls_ref, bcls_ref, o_ref):
    # p: [K_bb, TM] bf16, wbb: [C_feat, K_bb] bf16, bbb: [C_feat, 1] f32,
    # wcls: [num_classes, C_feat] bf16, bcls: [num_classes, 1] f32,
    # o: [num_classes, TM] f32.
    feat = jnp.dot(wbb_ref[...], p_ref[...],
                   preferred_element_type=jnp.float32)           # [C_feat, TM]
    feat = jnp.maximum(feat + bbb_ref[...], 0.0)                 # f32 epilogue
    logits = jnp.dot(wcls_ref[...], feat.astype(wcls_ref.dtype),
                     preferred_element_type=jnp.float32)         # [K_cls, TM]
    o_ref[...] = (logits + bcls_ref[...]).astype(o_ref.dtype)


def fused_conv_classifier(patches_t, wbb, bbb, wcls, bcls, *, tm):
    k_bb, m = patches_t.shape
    c_feat = wbb.shape[0]
    num_classes = wcls.shape[0]
    assert m % tm == 0
    return pl.pallas_call(
        _fused_conv_cls_kernel,
        out_shape=jax.ShapeDtypeStruct((num_classes, m), jnp.float32),
        grid=(m // tm,),
        in_specs=[
            pl.BlockSpec((k_bb, tm), lambda i: (0, i)),          # patches tile
            pl.BlockSpec((c_feat, k_bb), lambda i: (0, 0)),      # resident W_bb
            pl.BlockSpec((c_feat, 1), lambda i: (0, 0)),         # resident b_bb
            pl.BlockSpec((num_classes, c_feat), lambda i: (0, 0)),
            pl.BlockSpec((num_classes, 1), lambda i: (0, 0)),
        ],
        out_specs=pl.BlockSpec((num_classes, tm), lambda i: (0, i)),
        compiler_params=pltpu.CompilerParams(
            dimension_semantics=("parallel",)),
    )(patches_t, wbb, bbb, wcls, bcls)


# ----------------------------------------------------------------------------
# Kernel 2: batched separable bilinear upsample, class<->batch swap absorbed
# into the output BlockSpec so no HBM transpose pass is needed.
# ----------------------------------------------------------------------------
def _bilinear_kernel(ah_ref, awt_ref, x_ref, o_ref):
    # ah: [H, Hi], awt: [Wi, W], x: [1, BN, Hi, Wi], o: [BN, 1, H, W]
    ah = ah_ref[...]
    awt = awt_ref[...]
    bn = x_ref.shape[1]
    for img_i in range(bn):                               # static, unrolled
        img = x_ref[0, img_i]                             # [Hi, Wi]
        tmp = jnp.dot(ah, img, preferred_element_type=jnp.float32)   # [H, Wi]
        out = jnp.dot(tmp, awt, preferred_element_type=jnp.float32)  # [H, W]
        o_ref[img_i, 0] = out.astype(o_ref.dtype)


def bilinear_upsample(logits_knhw, a_h, a_wt, *, bn):
    """logits [K, N, Hi, Wi] -> output [N, K, H, W] (layout swap via BlockSpec)."""
    k, n, hin, win = logits_knhw.shape
    hout = a_h.shape[0]
    wout = a_wt.shape[1]
    n_pad = _round_up(n, bn)
    if n_pad != n:
        logits_knhw = jnp.pad(
            logits_knhw, ((0, 0), (0, n_pad - n), (0, 0), (0, 0)))
    out = pl.pallas_call(
        _bilinear_kernel,
        out_shape=jax.ShapeDtypeStruct((n_pad, k, hout, wout), jnp.float32),
        grid=(k, n_pad // bn),
        in_specs=[
            pl.BlockSpec((hout, hin), lambda c, b: (0, 0)),        # A_h resident
            pl.BlockSpec((win, wout), lambda c, b: (0, 0)),        # A_w^T resident
            pl.BlockSpec((1, bn, hin, win), lambda c, b: (c, b, 0, 0)),
        ],
        out_specs=pl.BlockSpec((bn, 1, hout, wout), lambda c, b: (b, c, 0, 0)),
        compiler_params=pltpu.CompilerParams(
            dimension_semantics=("parallel", "parallel")),
    )(a_h, a_wt, logits_knhw)
    if n_pad != n:
        out = out[:n]
    return out


# ----------------------------------------------------------------------------
# Glue: transposed im2col, bilinear matrices, parameter init, forward.
# ----------------------------------------------------------------------------
def im2col_t_3x3_s2_p1(x):
    """x: [N,C,H,W] -> patches^T [C*9, N*Ho*Wo] for 3x3 conv, stride 2, pad 1."""
    n, c, h, w = x.shape
    ho = (h - 1) // 2 + 1
    wo = (w - 1) // 2 + 1
    xp = jnp.pad(x, ((0, 0), (0, 0), (1, 1), (1, 1)))
    taps = []
    for kh in range(3):
        for kw in range(3):
            taps.append(xp[:, :, kh:kh + 2 * ho:2, kw:kw + 2 * wo:2])
    p = jnp.stack(taps, axis=2)                 # [N, C, 9, Ho, Wo]
    p = p.transpose(1, 2, 0, 3, 4)              # [C, 9, N, Ho, Wo]
    return p.reshape(c * 9, n * ho * wo), (ho, wo)


def bilinear_matrix(out_size, in_size):
    """PyTorch-style bilinear (align_corners=False) as a dense [out, in] matrix."""
    scale = in_size / out_size
    o = jnp.arange(out_size, dtype=jnp.float32)
    src = (o + 0.5) * scale - 0.5
    src = jnp.maximum(src, 0.0)
    i0 = jnp.floor(src).astype(jnp.int32)
    i0 = jnp.minimum(i0, in_size - 1)
    i1 = jnp.minimum(i0 + 1, in_size - 1)
    w1 = src - i0.astype(jnp.float32)
    w0 = 1.0 - w1
    a = jnp.zeros((out_size, in_size), dtype=jnp.float32)
    rows = jnp.arange(out_size)
    a = a.at[rows, i0].add(w0)
    a = a.at[rows, i1].add(w1)
    return a


def segmentation_forward(x, params, *, tm_max=2048, bn_max=8):
    """x: [N, C_in, H, W] (NCHW f32) -> logits [N, num_classes, H, W]."""
    n, c_in, h, w = x.shape
    w_bb, b_bb = params["w_bb"], params["b_bb"]
    w_cls, b_cls = params["w_cls"], params["b_cls"]
    c_feat = w_bb.shape[0]
    num_classes = w_cls.shape[0]

    # --- transposed im2col (K-major) + pad M up to the tile size -------------
    patches_t, (ho, wo) = im2col_t_3x3_s2_p1(x)       # [C_in*9, M] f32
    m = n * ho * wo
    tm = min(tm_max, _round_up(m, 128))               # lane-dense M tiles
    m_pad = _round_up(m, tm)
    if m_pad != m:
        patches_t = jnp.pad(patches_t, ((0, 0), (0, m_pad - m)))
    patches_t = patches_t.astype(jnp.bfloat16)

    # --- fused backbone conv + ReLU + 1x1 classifier (one pallas_call) -------
    wbb_mat = w_bb.reshape(c_feat, c_in * 9).astype(jnp.bfloat16)
    wcls_mat = w_cls.reshape(num_classes, c_feat).astype(jnp.bfloat16)
    bbb = b_bb.reshape(c_feat, 1).astype(jnp.float32)
    bcls = b_cls.reshape(num_classes, 1).astype(jnp.float32)
    logits_t = fused_conv_classifier(
        patches_t, wbb_mat, bbb, wcls_mat, bcls, tm=tm)  # [num_classes, M_pad]
    logits = logits_t[:, :m].reshape(num_classes, n, ho, wo)

    # --- bilinear upsample back to (H, W) ------------------------------------
    a_h = bilinear_matrix(h, ho)                      # [H, Ho]
    a_wt = bilinear_matrix(w, wo).T                   # [Wo, W]
    bn = min(bn_max, n)
    return bilinear_upsample(logits, a_h, a_wt, bn=bn)   # [N, num_classes, H, W]


def init_params(key, c_in, c_feat, num_classes):
    k1, k2, k3, k4 = jax.random.split(key, 4)
    return {
        "w_bb": jax.random.normal(k1, (c_feat, c_in, 3, 3), jnp.float32) * 0.1,
        "b_bb": jax.random.normal(k2, (c_feat,), jnp.float32) * 0.1,
        "w_cls": jax.random.normal(k3, (num_classes, c_feat, 1, 1), jnp.float32) * 0.1,
        "b_cls": jax.random.normal(k4, (num_classes,), jnp.float32) * 0.1,
    }


def _reference_forward(x, params):
    """Pure-JAX (XLA) reference for correctness checking."""
    w_bb, b_bb = params["w_bb"], params["b_bb"]
    w_cls, b_cls = params["w_cls"], params["b_cls"]
    feat = lax.conv_general_dilated(
        x, w_bb, window_strides=(2, 2), padding=((1, 1), (1, 1)),
        dimension_numbers=("NCHW", "OIHW", "NCHW"))
    feat = jnp.maximum(feat + b_bb[None, :, None, None], 0.0)
    logits = jnp.einsum("kc,nchw->nkhw", w_cls[:, :, 0, 0], feat)
    logits = logits + b_cls[None, :, None, None]
    h, w = x.shape[-2:]
    a_h = bilinear_matrix(h, logits.shape[2])
    a_w = bilinear_matrix(w, logits.shape[3])
    return jnp.einsum("oh,nkhw,pw->nkop", a_h, logits, a_w)


if __name__ == "__main__":
    N, C_IN, H, W = 2, 4, 16, 16
    C_FEAT, NUM_CLASSES = 32, 6

    key = jax.random.PRNGKey(0)
    kx, kp = jax.random.split(key)
    x = jax.random.normal(kx, (N, C_IN, H, W), jnp.float32)
    params = init_params(kp, C_IN, C_FEAT, NUM_CLASSES)

    out = jax.jit(segmentation_forward)(x, params)
    out = jax.block_until_ready(out)

    assert out.shape == (N, NUM_CLASSES, H, W), out.shape
    assert bool(jnp.all(jnp.isfinite(out)))

    ref = _reference_forward(x, params)
    max_err = float(jnp.max(jnp.abs(out - ref)))
    assert bool(jnp.allclose(out, ref, atol=5e-2, rtol=5e-2)), max_err

    print("KERNEL_OK")
</pallas_src>

<mosaic_0001>
module attributes {stable_mosaic.version = 11 : i64} {
  func.func @_fused_conv_cls_kernel(%arg0: i32, %arg1: memref<36x128xbf16, #tpu.memory_space<vmem>>, %arg2: memref<32x36xbf16, #tpu.memory_space<vmem>>, %arg3: memref<32x1xf32, #tpu.memory_space<vmem>>, %arg4: memref<6x32xbf16, #tpu.memory_space<vmem>>, %arg5: memref<6x1xf32, #tpu.memory_space<vmem>>, %arg6: memref<6x128xf32, #tpu.memory_space<vmem>>) attributes {dimension_semantics = [#tpu.dimension_semantics<parallel>], iteration_bounds = array<i64: 1>, scalar_prefetch = 0 : i64, scratch_operands = 0 : i64, tpu.core_type = #tpu.core_type<tc>, window_params = [{transform_indices = @transform_0, window_bounds = array<i64: 36, 128>}, {pipeline_mode = #tpu.pipeline_mode<synchronous>, transform_indices = @transform_1, window_bounds = array<i64: 32, 36>}, {pipeline_mode = #tpu.pipeline_mode<synchronous>, transform_indices = @transform_2, window_bounds = array<i64: 32, 1>}, {pipeline_mode = #tpu.pipeline_mode<synchronous>, transform_indices = @transform_3, window_bounds = array<i64: 6, 32>}, {pipeline_mode = #tpu.pipeline_mode<synchronous>, transform_indices = @transform_4, window_bounds = array<i64: 6, 1>}, {transform_indices = @transform_5, window_bounds = array<i64: 6, 128>}]} {
    %c0 = arith.constant 0 : index
    %c0_0 = arith.constant 0 : index
    %0 = vector.load %arg2[%c0, %c0_0] : memref<32x36xbf16, #tpu.memory_space<vmem>>, vector<32x36xbf16>
    %c0_1 = arith.constant 0 : index
    %c0_2 = arith.constant 0 : index
    %1 = vector.load %arg1[%c0_1, %c0_2] : memref<36x128xbf16, #tpu.memory_space<vmem>>, vector<36x128xbf16>
    %cst = arith.constant dense<0.000000e+00> : vector<32x128xf32>
    %2 = tpu.matmul %0, %1, %cst {dimension_numbers = #tpu.dot_dimension_numbers<[1], [0], [0], [1], [0, 0, 1, 1], [], []>} : vector<32x36xbf16>, vector<36x128xbf16>, vector<32x128xf32> -> vector<32x128xf32>
    %c0_3 = arith.constant 0 : index
    %c0_4 = arith.constant 0 : index
    %3 = vector.load %arg3[%c0_3, %c0_4] : memref<32x1xf32, #tpu.memory_space<vmem>>, vector<32x1xf32>
    %4 = vector.broadcast %3 : vector<32x1xf32> to vector<32x128xf32>
    %5 = arith.addf %2, %4 : vector<32x128xf32>
    %cst_5 = arith.constant 0.000000e+00 : f32
    %6 = vector.broadcast %cst_5 : f32 to vector<32x128xf32>
    %7 = arith.maximumf %5, %6 : vector<32x128xf32>
    %c0_6 = arith.constant 0 : index
    %c0_7 = arith.constant 0 : index
    %8 = vector.load %arg4[%c0_6, %c0_7] : memref<6x32xbf16, #tpu.memory_space<vmem>>, vector<6x32xbf16>
    %9 = arith.truncf %7 : vector<32x128xf32> to vector<32x128xbf16>
    %cst_8 = arith.constant dense<0.000000e+00> : vector<6x128xf32>
    %10 = tpu.matmul %8, %9, %cst_8 {dimension_numbers = #tpu.dot_dimension_numbers<[1], [0], [0], [1], [0, 0, 1, 1], [], []>} : vector<6x32xbf16>, vector<32x128xbf16>, vector<6x128xf32> -> vector<6x128xf32>
    %c0_9 = arith.constant 0 : index
    %c0_10 = arith.constant 0 : index
    %11 = vector.load %arg5[%c0_9, %c0_10] : memref<6x1xf32, #tpu.memory_space<vmem>>, vector<6x1xf32>
    %12 = vector.broadcast %11 : vector<6x1xf32> to vector<6x128xf32>
    %13 = arith.addf %10, %12 : vector<6x128xf32>
    %c0_11 = arith.constant 0 : index
    %c0_12 = arith.constant 0 : index
    %14 = vector.load %arg6[%c0_11, %c0_12] : memref<6x128xf32, #tpu.memory_space<vmem>>, vector<6x128xf32>
    tpu.vector_store %arg6[%c0_11, %c0_12], %13 {strides = array<i32>} : memref<6x128xf32, #tpu.memory_space<vmem>>, vector<6x128xf32>,
    return
  }
  func.func @transform_0(%arg0: i32) -> (i32, i32) {
    %c0_i32 = arith.constant 0 : i32
    %c0_i32_0 = arith.constant 0 : i32
    return %c0_i32, %arg0 : i32, i32
  }
  func.func @transform_1(%arg0: i32) -> (i32, i32) {
    %c0_i32 = arith.constant 0 : i32
    %c0_i32_0 = arith.constant 0 : i32
    %c0_i32_1 = arith.constant 0 : i32
    return %c0_i32, %c0_i32_0 : i32, i32
  }
  func.func @transform_2(%arg0: i32) -> (i32, i32) {
    %c0_i32 = arith.constant 0 : i32
    %c0_i32_0 = arith.constant 0 : i32
    %c0_i32_1 = arith.constant 0 : i32
    return %c0_i32, %c0_i32_0 : i32, i32
  }
  func.func @transform_3(%arg0: i32) -> (i32, i32) {
    %c0_i32 = arith.constant 0 : i32
    %c0_i32_0 = arith.constant 0 : i32
    %c0_i32_1 = arith.constant 0 : i32
    return %c0_i32, %c0_i32_0 : i32, i32
  }
  func.func @transform_4(%arg0: i32) -> (i32, i32) {
    %c0_i32 = arith.constant 0 : i32
    %c0_i32_0 = arith.constant 0 : i32
    %c0_i32_1 = arith.constant 0 : i32
    return %c0_i32, %c0_i32_0 : i32, i32
  }
  func.func @transform_5(%arg0: i32) -> (i32, i32) {
    %c0_i32 = arith.constant 0 : i32
    %c0_i32_0 = arith.constant 0 : i32
    return %c0_i32, %arg0 : i32, i32
  }
}

module attributes {stable_mosaic.version = 11 : i64} {
  func.func @_bilinear_kernel(%arg0: i32, %arg1: i32, %arg2: memref<16x8xf32, #tpu.memory_space<vmem>>, %arg3: memref<8x16xf32, #tpu.memory_space<vmem>>, %arg4: memref<1x2x8x8xf32, #tpu.memory_space<vmem>>, %arg5: memref<2x1x16x16xf32, #tpu.memory_space<vmem>>) attributes {dimension_semantics = [#tpu.dimension_semantics<parallel>, #tpu.dimension_semantics<parallel>], iteration_bounds = array<i64: 6, 1>, scalar_prefetch = 0 : i64, scratch_operands = 0 : i64, tpu.core_type = #tpu.core_type<tc>, window_params = [{pipeline_mode = #tpu.pipeline_mode<synchronous>, transform_indices = @transform_0, window_bounds = array<i64: 16, 8>}, {pipeline_mode = #tpu.pipeline_mode<synchronous>, transform_indices = @transform_1, window_bounds = array<i64: 8, 16>}, {transform_indices = @transform_2, window_bounds = array<i64: 1, 2, 8, 8>}, {transform_indices = @transform_3, window_bounds = array<i64: 2, 1, 16, 16>}]} {
    %c0 = arith.constant 0 : index
    %c0_0 = arith.constant 0 : index
    %0 = vector.load %arg2[%c0, %c0_0] : memref<16x8xf32, #tpu.memory_space<vmem>>, vector<16x8xf32>
    %c0_1 = arith.constant 0 : index
    %c0_2 = arith.constant 0 : index
    %1 = vector.load %arg3[%c0_1, %c0_2] : memref<8x16xf32, #tpu.memory_space<vmem>>, vector<8x16xf32>
    %c0_3 = arith.constant 0 : index
    %c0_4 = arith.constant 0 : index
    %c0_5 = arith.constant 0 : index
    %c0_6 = arith.constant 0 : index
    %2 = vector.load %arg4[%c0_3, %c0_4, %c0_5, %c0_6] : memref<1x2x8x8xf32, #tpu.memory_space<vmem>>, vector<1x1x8x8xf32>
    %3 = vector.shape_cast %2 : vector<1x1x8x8xf32> to vector<8x8xf32>
    %cst = arith.constant dense<0.000000e+00> : vector<16x8xf32>
    %4 = tpu.matmul %0, %3, %cst {dimension_numbers = #tpu.dot_dimension_numbers<[1], [0], [0], [1], [0, 0, 1, 1], [], []>} : vector<16x8xf32>, vector<8x8xf32>, vector<16x8xf32> -> vector<16x8xf32>
    %cst_7 = arith.constant dense<0.000000e+00> : vector<16x16xf32>
    %5 = tpu.matmul %4, %1, %cst_7 {dimension_numbers = #tpu.dot_dimension_numbers<[1], [0], [0], [1], [0, 0, 1, 1], [], []>} : vector<16x8xf32>, vector<8x16xf32>, vector<16x16xf32> -> vector<16x16xf32>
    %c0_8 = arith.constant 0 : index
    %c0_9 = arith.constant 0 : index
    %c0_10 = arith.constant 0 : index
    %c0_11 = arith.constant 0 : index
    %6 = vector.load %arg5[%c0_8, %c0_9, %c0_10, %c0_11] : memref<2x1x16x16xf32, #tpu.memory_space<vmem>>, vector<1x1x16x16xf32>
    %7 = vector.shape_cast %6 : vector<1x1x16x16xf32> to vector<16x16xf32>
    %8 = vector.shape_cast %5 : vector<16x16xf32> to vector<1x1x16x16xf32>
    tpu.vector_store %arg5[%c0_8, %c0_9, %c0_10, %c0_11], %8 {strides = array<i32>} : memref<2x1x16x16xf32, #tpu.memory_space<vmem>>, vector<1x1x16x16xf32>,
    %c0_12 = arith.constant 0 : index
    %c1 = arith.constant 1 : index
    %c0_13 = arith.constant 0 : index
    %c0_14 = arith.constant 0 : index
    %9 = vector.load %arg4[%c0_12, %c1, %c0_13, %c0_14] : memref<1x2x8x8xf32, #tpu.memory_space<vmem>>, vector<1x1x8x8xf32>
    %10 = vector.shape_cast %9 : vector<1x1x8x8xf32> to vector<8x8xf32>
    %cst_15 = arith.constant dense<0.000000e+00> : vector<16x8xf32>
    %11 = tpu.matmul %0, %10, %cst_15 {dimension_numbers = #tpu.dot_dimension_numbers<[1], [0], [0], [1], [0, 0, 1, 1], [], []>} : vector<16x8xf32>, vector<8x8xf32>, vector<16x8xf32> -> vector<16x8xf32>
    %cst_16 = arith.constant dense<0.000000e+00> : vector<16x16xf32>
    %12 = tpu.matmul %11, %1, %cst_16 {dimension_numbers = #tpu.dot_dimension_numbers<[1], [0], [0], [1], [0, 0, 1, 1], [], []>} : vector<16x8xf32>, vector<8x16xf32>, vector<16x16xf32> -> vector<16x16xf32>
    %c1_17 = arith.constant 1 : index
    %c0_18 = arith.constant 0 : index
    %c0_19 = arith.constant 0 : index
    %c0_20 = arith.constant 0 : index
    %13 = vector.load %arg5[%c1_17, %c0_18, %c0_19, %c0_20] : memref<2x1x16x16xf32, #tpu.memory_space<vmem>>, vector<1x1x16x16xf32>
    %14 = vector.shape_cast %13 : vector<1x1x16x16xf32> to vector<16x16xf32>
    %15 = vector.shape_cast %12 : vector<16x16xf32> to vector<1x1x16x16xf32>
    tpu.vector_store %arg5[%c1_17, %c0_18, %c0_19, %c0_20], %15 {strides = array<i32>} : memref<2x1x16x16xf32, #tpu.memory_space<vmem>>, vector<1x1x16x16xf32>,
    return
  }
  func.func @transform_0(%arg0: i32, %arg1: i32) -> (i32, i32) {
    %c0_i32 = arith.constant 0 : i32
    %c0_i32_0 = arith.constant 0 : i32
    %c0_i32_1 = arith.constant 0 : i32
    return %c0_i32, %c0_i32_0 : i32, i32
  }
  func.func @transform_1(%arg0: i32, %arg1: i32) -> (i32, i32) {
    %c0_i32 = arith.constant 0 : i32
    %c0_i32_0 = arith.constant 0 : i32
    %c0_i32_1 = arith.constant 0 : i32
    return %c0_i32, %c0_i32_0 : i32, i32
  }
  func.func @transform_2(%arg0: i32, %arg1: i32) -> (i32, i32, i32, i32) {
    %c0_i32 = arith.constant 0 : i32
    %c0_i32_0 = arith.constant 0 : i32
    %c0_i32_1 = arith.constant 0 : i32
    return %arg0, %arg1, %c0_i32, %c0_i32_0 : i32, i32, i32, i32
  }
  func.func @transform_3(%arg0: i32, %arg1: i32) -> (i32, i32, i32, i32) {
    %c0_i32 = arith.constant 0 : i32
    %c0_i32_0 = arith.constant 0 : i32
    %c0_i32_1 = arith.constant 0 : i32
    return %arg1, %arg0, %c0_i32, %c0_i32_0 : i32, i32, i32, i32
  }
}

</mosaic_0001>

<llo_original>
// kernel: segmentation_forward.3
$region0: #{segmentation_forward.3}
  #allocation0 [shape = 'u32[]', space=smem, size = 0x4, offset = 0x4, fixed_abs, tag = 'smem constant byte address 0x4 - core index']
  #allocation1 [shape = 'u32[72,128]{1,0:T(1,128)}', space=vmem, size = 0x9000, scoped, tag = 'internal scratch']
  #allocation4 [shape = 's32[]', space=sflag, size = 0x4, offset = 0, fixed_abs, tag = 'sflag constant byte address 0x0 - dummy sync flag']
  %s0 = inlined_call_operand.vmem [shape: f32[16,8], index: 0, kind: input, shape index: {}]
  %s1 = inlined_call_operand.vmem [shape: f32[8,16], index: 1, kind: input, shape index: {}]
  %s2 = inlined_call_operand.vmem [shape: f32[6,2,8,8], index: 2, kind: input, shape index: {}]
  %s3 = inlined_call_operand.hbm [shape: f32[2,6,16,16], index: 3, kind: output, shape index: {}]
  %s4 = sld [smem:[#allocation0]]
  $region45: #{segmentation_forward.3} parent=0
    _
  %s6 = ssub.s32 1, %s4
  %s7 = scalar_select 0, %s6, %s4
  $region1: #{segmentation_forward.3} parent=0
    #allocation2 [shape = 'u8[32768]{0}', space=vmem, size = 0x8000, scoped, tag = 'output window, operand 0']
    #allocation3 [shape = 's32[2]{0}', space=sflag, size = 0x8, scoped, tag = 'scoped memory for segmentation_forward.3']
    %8 = vsyncpa [#allocation3], 0
    %s9 = scalar_lea.sflag [#allocation3], 1
    %10 = vsyncpa %s9, 0
    loop: start=0, step=1, limit=8
    $region2: #{segmentation_forward.3} parent=1 // loop_pre_header
      _
    $region3: #{segmentation_forward.3} parent=1 // loop_header
      %s12 = sphi 0, %s16
      %p13 = scmp.ge.s32.totalorder %s12, 8
      %s19 = sphi 0, %s31
      %s20 = sphi 0, %s27
      %s21 = sphi 0, %s19
      %s22 = sphi 0, %s20
      %s23 = sphi 0, %s21
      %s24 = sphi 0, %s22
      %s32 = sphi 0, %s32
      %s34 = sphi 0, %s32
      %s35 = sphi 0, %s34
      %s49 = sphi 0, %s35
      %s53 = sphi 0, %s53
      %s55 = sphi 0, %s53
      %s56 = sphi 0, %s55
      %s70 = sphi 0, %s56
      %s78 = sphi 0, %s80
      %s81 = sphi 0, %s78
      %s82 = sphi 0, %s81
      %s98 = sphi 0, %s82
      %s106 = sphi 0, %s108
      %s109 = sphi 0, %s106
      %s110 = sphi 0, %s109
      %s126 = sphi 0, %s110
    $region4: #{segmentation_forward.3} parent=1 // loop_header_branch
      %15 = sbr.rel (%p13) target = $region8
    $region5: #{segmentation_forward.3} parent=1 // loop_body
      %s17 = ssub.s32 %s12, 1
      %s18 = ssub.s32 %s12, 2
      %s25 = sadd.s32 1, %s20
      %p26 = scmp.ge.s32.totalorder %s25, 1
      %s27 = scalar_select %p26, 0, %s25
      %s28 = sadd.s32 1, %s19
      %s29 = scalar_select %p26, %s28, %s19
      %p30 = scmp.ge.s32.totalorder %s29, 6
      %s31 = scalar_select %p30, 0, %s29
      %s33 = sadd.s32 %s32, 1
      %p36 = scmp.eq.s32.totalorder %s12, 5
      %p37 = scmp.ne.s32.totalorder %s32, %s34
      %p38 = scmp.eq.s32.totalorder %s12, 0
      %p39 = por %p37, %p38
      %p40 = scmp.ne.s32.totalorder %s32, %s34
      %p41 = scmp.eq.s32.totalorder %s17, 5
      %p42 = por %p40, %p41
      %p43 = scmp.ne.s32.totalorder %s34, %s35
      %p44 = scmp.eq.s32.totalorder %s17, 0
      %p45 = por %p43, %p44
      %p46 = scmp.ne.s32.totalorder %s34, %s35
      %p47 = scmp.eq.s32.totalorder %s18, 5
      %p48 = por %p46, %p47
      %p50 = scmp.ne.s32.totalorder %s35, %s49
      %p51 = scmp.eq.s32.totalorder %s18, 0
      %p52 = por %p50, %p51
      %s54 = sadd.s32 %s53, 1
      %p57 = scmp.eq.s32.totalorder %s12, 5
      %p58 = scmp.ne.s32.totalorder %s53, %s55
      %p59 = scmp.eq.s32.totalorder %s12, 0
      %p60 = por %p58, %p59
      %p61 = scmp.ne.s32.totalorder %s53, %s55
      %p62 = scmp.eq.s32.totalorder %s17, 5
      %p63 = por %p61, %p62
      %p64 = scmp.ne.s32.totalorder %s55, %s56
      %p65 = scmp.eq.s32.totalorder %s17, 0
      %p66 = por %p64, %p65
      %p67 = scmp.ne.s32.totalorder %s55, %s56
      %p68 = scmp.eq.s32.totalorder %s18, 5
      %p69 = por %p67, %p68
      %p71 = scmp.ne.s32.totalorder %s56, %s70
      %p72 = scmp.eq.s32.totalorder %s18, 0
      %p73 = por %p71, %p72
      %s74 = ssub.s32 %s19, %s31
      %s75 = ssub.s32 %s20, %s27
      %s76 = sor.u32 %s74, %s75
      %p77 = scmp.eq.s32.totalorder %s76, 0
      %s79 = sadd.s32 %s78, 1
      %s80 = scalar_select %p77, %s78, %s79
      %p83 = pneg %p77
      %p84 = scmp.eq.s32.totalorder %s12, 5
      %p85 = por %p83, %p84
      %p86 = scmp.ne.s32.totalorder %s78, %s81
      %p87 = scmp.eq.s32.totalorder %s12, 0
      %p88 = por %p86, %p87
      %p89 = scmp.ne.s32.totalorder %s78, %s81
      %p90 = scmp.eq.s32.totalorder %s17, 5
      %p91 = por %p89, %p90
      %p92 = scmp.ne.s32.totalorder %s81, %s82
      %p93 = scmp.eq.s32.totalorder %s17, 0
      %p94 = por %p92, %p93
      %p95 = scmp.ne.s32.totalorder %s81, %s82
      %p96 = scmp.eq.s32.totalorder %s18, 5
      %p97 = por %p95, %p96
      %p99 = scmp.ne.s32.totalorder %s82, %s98
      %p100 = scmp.eq.s32.totalorder %s18, 0
      %p101 = por %p99, %p100
      %s102 = ssub.s32 %s20, %s27
      %s103 = ssub.s32 %s19, %s31
      %s104 = sor.u32 %s102, %s103
      %p105 = scmp.eq.s32.totalorder %s104, 0
      %s107 = sadd.s32 %s106, 1
      %s108 = scalar_select %p105, %s106, %s107
      %p111 = pneg %p105
      %p112 = scmp.eq.s32.totalorder %s12, 5
      %p113 = por %p111, %p112
      %p114 = scmp.ne.s32.totalorder %s106, %s109
      %p115 = scmp.eq.s32.totalorder %s12, 0
      %p116 = por %p114, %p115
      %p117 = scmp.ne.s32.totalorder %s106, %s109
      %p118 = scmp.eq.s32.totalorder %s17, 5
      %p119 = por %p117, %p118
      %p120 = scmp.ne.s32.totalorder %s109, %s110
      %p121 = scmp.eq.s32.totalorder %s17, 0
      %p122 = por %p120, %p121
      %p123 = scmp.ne.s32.totalorder %s109, %s110
      %p124 = scmp.eq.s32.totalorder %s18, 5
      %p125 = por %p123, %p124
      %p127 = scmp.ne.s32.totalorder %s110, %s126
      %p128 = scmp.eq.s32.totalorder %s18, 0
      %p129 = por %p127, %p128
      %p130 = scmp.le.s32.totalorder 1, %s12
      %p131 = scmp.lt.s32.totalorder %s12, 7
      %p132 = pnand %p130, %p131
      %p133 = pneg %p132
      // Predicated region
      $region9: #{segmentation_forward.3} parent=5 // pred_check
        _
      $region10: #{segmentation_forward.3} parent=5 // pred_check_branch
        %135 = sbr.rel (%p132) target = $region12
      $region11: #{segmentation_forward.3} parent=5 // pred_region
        %s136 = ssub.s32 %s12, 1
        // Predicated region
        $region13: #{segmentation_forward.3} parent=11 // pred_check
          %p137 = pneg %p45
        $region14: #{segmentation_forward.3} parent=11 // pred_check_branch
          %139 = sbr.rel (%p137) target = $region16
        $region15: #{segmentation_forward.3} parent=11 // pred_region
          _
        $region16: #{segmentation_forward.3} parent=11 // pred_fallthru
          _
        // Predicated region
        $region17: #{segmentation_forward.3} parent=11 // pred_check
          %p140 = pneg %p66
        $region18: #{segmentation_forward.3} parent=11 // pred_check_branch
          %142 = sbr.rel (%p140) target = $region20
        $region19: #{segmentation_forward.3} parent=11 // pred_region
          _
        $region20: #{segmentation_forward.3} parent=11 // pred_fallthru
          _
      $region12: #{segmentation_forward.3} parent=5 // pred_fallthru
        _
      %p143 = scmp.lt.s32.totalorder %s12, 6
      // Predicated region
      $region21: #{segmentation_forward.3} parent=5 // pred_check
        %p144 = pneg %p143
      $region22: #{segmentation_forward.3} parent=5 // pred_check_branch
        %146 = sbr.rel (%p144) target = $region24
      $region23: #{segmentation_forward.3} parent=5 // pred_region
        // Predicated region
        $region25: #{segmentation_forward.3} parent=23 // pred_check
          %p147 = pneg %p88
        $region26: #{segmentation_forward.3} parent=23 // pred_check_branch
          %149 = sbr.rel (%p147) target = $region28
        $region27: #{segmentation_forward.3} parent=23 // pred_region
          %s150 = smul.u32 2, %s20
          %p151 = scmp.lt.s32.totalorder %s19, 5
          %s152 = scalar_select %p151, %s19, 5
          %p153 = scmp.lt.s32.totalorder %s150, 1
          %s154 = scalar_select %p153, %s150, 1
          %s155 = smul.addr %s152, 2
          %s156 = sadd.s32 %s154, %s155
          %s157 = smul.addr %s156, 8
          %s158 = scalar_lea.vmem %s2, %s157
          %s159 = smul.u32 2, %s20
        $region28: #{segmentation_forward.3} parent=23 // pred_fallthru
          _
      $region24: #{segmentation_forward.3} parent=5 // pred_fallthru
        _
      %p160 = scmp.le.s32.totalorder 1, %s12
      %p161 = scmp.lt.s32.totalorder %s12, 7
      %p162 = pnand %p160, %p161
      %p163 = pneg %p162
      // Predicated region
      $region29: #{segmentation_forward.3} parent=5 // pred_check
        _
      $region30: #{segmentation_forward.3} parent=5 // pred_check_branch
        %165 = sbr.rel (%p162) target = $region32
      $region31: #{segmentation_forward.3} parent=5 // pred_region
        %s166 = ssub.s32 %s12, 1
        %p167 = pneg %p45
        %p168 = pneg %p42
        %p169 = pneg %p66
        %p170 = pneg %p63
        %s171 = smul.u32 2, %s22
        %p172 = scmp.lt.s32.totalorder %s21, 5
        %s173 = scalar_select %p172, %s21, 5
        %p174 = scmp.lt.s32.totalorder %s171, 1
        %s175 = scalar_select %p174, %s171, 1
        %s176 = smul.addr %s173, 2
        %s177 = sadd.s32 %s175, %s176
        %s178 = smul.addr %s177, 8
        %s179 = scalar_lea.vmem %s2, %s178
        %p180 = pneg %p94
        %p181 = pneg %p91
        %p182 = pneg %p122
        %p183 = pneg %p119
        %s184 = sand.u32 %s109, 1
        %s185 = scalar_lea.sflag [#allocation3], %s184
        %s186 = sand.u32 %s109, 1
        %s187 = smul.addr %s186, 32
        %s188 = scalar_lea.vmem [#allocation2], %s187
        %s189 = smul.u32 2, %s22
        %p190 = scmp.lt.s32.totalorder %s21, 5
        %s191 = scalar_select %p190, %s21, 5
        %p192 = scmp.lt.s32.totalorder %s189, 1
        %s193 = scalar_select %p192, %s189, 1
        %s194 = smul.addr %s191, 2
        %s195 = sadd.s32 %s193, %s194
        %s196 = smul.addr %s195, 8
        %s197 = scalar_lea.vmem %s2, %s196
        %s198 = smul.u32 2, %s22
        %s199 = smul.u32 2, %s22
        %v200 = vld [vmem:[%s0] sm:$0xff]
        %v201 = vld [vmem:[%s0 + $0x8] sm:$0xff]
        %v202 = vld [vmem:[%s1] sm:$0xff]
        %v203 = vld [vmem:[%s197] sm:$0xff]
        %vm204 = vcmask 64512
        %v206 = vsel %vm204, %v200, 0
        %v209 = vsel %vm204, %v201, 0
        %211 = vmatpush.msra.mxu0 0.0
        %212 = vmatpush.msra.mxu0 0.0
        %213 = vmatpush.msra.mxu0 0.0
        %214 = vmatpush.msra.mxu0 0.0
        %215 = vmatpush.msra.mxu0 0.0
        %216 = vmatpush.msra.mxu0 0.0
        %217 = vmatpush.msra.mxu0 0.0
        %218 = vmatpush.msra.mxu0 0.0
        %219 = vmatpush.msra.mxu0 0.0
        %220 = vmatpush.msra.mxu0 0.0
        %221 = vmatpush.msra.mxu0 0.0
        %222 = vmatpush.msra.mxu0 0.0
        %223 = vmatpush.msra.mxu0 0.0
        %224 = vmatpush.msra.mxu0 0.0
        %225 = vmatpush.msra.mxu0 0.0
        %226 = vmatpush.msra.mxu0 %v203
        %227 = vmatmul.f32.gmra.mxu0 %v206
        %v228 = vpop.f32.mrf.mxu0
        %v229 = vadd.f32 0.0, %v228
        %230 = vmatmul.f32.gmra.mxu0 %v209
        %v231 = vpop.f32.mrf.mxu0
        %v232 = vadd.f32 0.0, %v231
        %233 = vdwg.mxu0
        %v235 = vsel %vm204, %v229, 0
        %v238 = vsel %vm204, %v232, 0
        %240 = vmatpush.msra.mxu0 0.0
        %241 = vmatpush.msra.mxu0 0.0
        %242 = vmatpush.msra.mxu0 0.0
        %243 = vmatpush.msra.mxu0 0.0
        %244 = vmatpush.msra.mxu0 0.0
        %245 = vmatpush.msra.mxu0 0.0
        %246 = vmatpush.msra.mxu0 0.0
        %247 = vmatpush.msra.mxu0 0.0
        %248 = vmatpush.msra.mxu0 0.0
        %249 = vmatpush.msra.mxu0 0.0
        %250 = vmatpush.msra.mxu0 0.0
        %251 = vmatpush.msra.mxu0 0.0
        %252 = vmatpush.msra.mxu0 0.0
        %253 = vmatpush.msra.mxu0 0.0
        %254 = vmatpush.msra.mxu0 0.0
        %255 = vmatpush.msra.mxu0 %v202
        %256 = vmatmul.f32.gmra.mxu0 %v235
        %v257 = vpop.f32.mrf.mxu0
        %v258 = vadd.f32 0.0, %v257
        %259 = vmatmul.f32.gmra.mxu0 %v238
        %v260 = vpop.f32.mrf.mxu0
        %v261 = vadd.f32 0.0, %v260
        %262 = vdwg.mxu0
        %vm263 = vcmask 130048
        %264 = vst.msk [vmem:[%s188] sm:$0xff] %vm263, %v258
        %265 = vst.msk [vmem:[%s188 + $0x8] sm:$0xff] %vm263, %v261
        %s266 = scalar_lea.vmem %s197, 8
        %v267 = vld [vmem:[%s266] sm:$0xff]
        %268 = vmatpush.msra.mxu0 0.0
        %269 = vmatpush.msra.mxu0 0.0
        %270 = vmatpush.msra.mxu0 0.0
        %271 = vmatpush.msra.mxu0 0.0
        %272 = vmatpush.msra.mxu0 0.0
        %273 = vmatpush.msra.mxu0 0.0
        %274 = vmatpush.msra.mxu0 0.0
        %275 = vmatpush.msra.mxu0 0.0
        %276 = vmatpush.msra.mxu0 0.0
        %277 = vmatpush.msra.mxu0 0.0
        %278 = vmatpush.msra.mxu0 0.0
        %279 = vmatpush.msra.mxu0 0.0
        %280 = vmatpush.msra.mxu0 0.0
        %281 = vmatpush.msra.mxu0 0.0
        %282 = vmatpush.msra.mxu0 0.0
        %283 = vmatpush.msra.mxu0 %v267
        %284 = vmatmul.f32.gmra.mxu0 %v206
        %v285 = vpop.f32.mrf.mxu0
        %v286 = vadd.f32 0.0, %v285
        %287 = vmatmul.f32.gmra.mxu0 %v209
        %v288 = vpop.f32.mrf.mxu0
        %v289 = vadd.f32 0.0, %v288
        %290 = vdwg.mxu0
        %v292 = vsel %vm204, %v286, 0
        %v295 = vsel %vm204, %v289, 0
        %297 = vmatpush.msra.mxu0 0.0
        %298 = vmatpush.msra.mxu0 0.0
        %299 = vmatpush.msra.mxu0 0.0
        %300 = vmatpush.msra.mxu0 0.0
        %301 = vmatpush.msra.mxu0 0.0
        %302 = vmatpush.msra.mxu0 0.0
        %303 = vmatpush.msra.mxu0 0.0
        %304 = vmatpush.msra.mxu0 0.0
        %305 = vmatpush.msra.mxu0 0.0
        %306 = vmatpush.msra.mxu0 0.0
        %307 = vmatpush.msra.mxu0 0.0
        %308 = vmatpush.msra.mxu0 0.0
        %309 = vmatpush.msra.mxu0 0.0
        %310 = vmatpush.msra.mxu0 0.0
        %311 = vmatpush.msra.mxu0 0.0
        %312 = vmatpush.msra.mxu0 %v202
        %313 = vmatmul.f32.gmra.mxu0 %v292
        %v314 = vpop.f32.mrf.mxu0
        %v315 = vadd.f32 0.0, %v314
        %316 = vmatmul.f32.gmra.mxu0 %v295
        %v317 = vpop.f32.mrf.mxu0
        %v318 = vadd.f32 0.0, %v317
        %319 = vdwg.mxu0
        %s320 = scalar_lea.vmem %s188, 16 [#allocation2]
        %321 = vst.msk [vmem:[%s320] sm:$0xff] %vm263, %v315
        %322 = vst.msk [vmem:[%s320 + $0x8] sm:$0xff] %vm263, %v318
        %s323 = sand.u32 %s109, 1
        %s324 = scalar_lea.sflag [#allocation3], %s323
        %s325 = sand.u32 %s109, 1
        %s326 = smul.addr %s325, 32
        %s327 = scalar_lea.vmem [#allocation2], %s326
        // Predicated region
        $region33: #{segmentation_forward.3} parent=31 // pred_check
          %p328 = pneg %p119
        $region34: #{segmentation_forward.3} parent=31 // pred_check_branch
          %330 = sbr.rel (%p328) target = $region36
        $region35: #{segmentation_forward.3} parent=31 // pred_region
          #allocation5 [shape = 'u32[6]{0}', space=smem, size = 0x18, scoped, tag = 'DMA stride descriptor']
          %s331 = smul.u32 2, %s22
          %333 = vsyncadd %s324, 0
          %s334 = smul.addr %s21, 2
          %s335 = smul.addr %s331, 12
          %s336 = sadd.s32 %s334, %s335
          %s337 = smul.addr %s336, 8
          %s338 = scalar_lea.hbm %s3, %s337
          %s340 = sshll.u32 1, 14
          %s341 = sxor.u32 4294967295, %s340
          %s344 = sshll.u32 7, 18
          %s345 = sxor.u32 4294967295, %s344
          %s346 = sand.u32 0, %s345
          %s348 = sor.u32 %s346, 0
          %s349 = sshll.u32 %s327, 4
          %s350 = int_to_ptr.vmem [resolvable:$true] %s349
          %s351 = sshll.u32 %s338, 4
          %s352 = int_to_ptr.hbm [resolvable:$true] %s351
          %358 = sst [smem:[#allocation5]] 256
          %s359 = scalar_lea.smem [#allocation5], 1
          %360 = sst [smem:[%s359]] 1536
          %s361 = scalar_lea.smem [#allocation5], 2
          %362 = sst [smem:[%s361]] 2
          %s363 = scalar_lea.smem [#allocation5], 3
          %364 = sst [smem:[%s363]] 128
          %s365 = scalar_lea.smem [#allocation5], 4
          %366 = sst [smem:[%s365]] 128
          %s367 = scalar_lea.smem [#allocation5], 5
          %368 = sst [smem:[%s367]] 8
          %370 = dma.general %s350, 512, %s352, %s324, [#allocation4], [#allocation5], %s348, 0
        $region36: #{segmentation_forward.3} parent=31 // pred_fallthru
          _
      $region32: #{segmentation_forward.3} parent=5 // pred_fallthru
        _
      %p371 = scmp.le.s32.totalorder 2, %s12
      // Predicated region
      $region37: #{segmentation_forward.3} parent=5 // pred_check
        %p372 = pneg %p371
      $region38: #{segmentation_forward.3} parent=5 // pred_check_branch
        %374 = sbr.rel (%p372) target = $region40
      $region39: #{segmentation_forward.3} parent=5 // pred_region
        %s375 = ssub.s32 %s12, 2
        // Predicated region
        $region41: #{segmentation_forward.3} parent=39 // pred_check
          %p376 = pneg %p125
        $region42: #{segmentation_forward.3} parent=39 // pred_check_branch
          %378 = sbr.rel (%p376) target = $region44
        $region43: #{segmentation_forward.3} parent=39 // pred_region
          %s379 = sand.u32 %s110, 1
          %s380 = scalar_lea.sflag [#allocation3], %s379
          %s381 = sand.u32 %s110, 1
          %s382 = smul.addr %s381, 32
          %s383 = scalar_lea.vmem [#allocation2], %s382
          %385 = dma.done %s380, 512
        $region44: #{segmentation_forward.3} parent=39 // pred_fallthru
          _
      $region40: #{segmentation_forward.3} parent=5 // pred_fallthru
        _
    $region6: #{segmentation_forward.3} parent=1 // loop_footer
      %s16 = sadd.s32 1, %s12
    $region7: #{segmentation_forward.3} parent=1 // loop_footer_branch
      %11 = sbr.rel target = $region3
    $region8: #{segmentation_forward.3} parent=1 // loop_exit
      _
    %386 = vsyncpa [#allocation3], 1
    %s387 = scalar_lea.sflag [#allocation3], 1
    %388 = vsyncpa %s387, 1

// kernel: segmentation_forward.2
$region0: #{segmentation_forward.2}
  #allocation0 [shape = 'u32[]', space=smem, size = 0x4, offset = 0x4, fixed_abs, tag = 'smem constant byte address 0x4 - core index']
  #allocation1 [shape = 'u32[72,128]{1,0:T(1,128)}', space=vmem, size = 0x9000, scoped, tag = 'internal scratch']
  %s0 = inlined_call_operand.vmem [shape: bf16[36,128], index: 0, kind: input, shape index: {}]
  %s1 = inlined_call_operand.vmem [shape: bf16[32,36], index: 1, kind: input, shape index: {}]
  %s2 = inlined_call_operand.vmem [shape: f32[32,1], index: 2, kind: input, shape index: {}]
  %s3 = inlined_call_operand.vmem [shape: bf16[6,32], index: 3, kind: input, shape index: {}]
  %s4 = inlined_call_operand.vmem [shape: f32[6,1], index: 4, kind: input, shape index: {}]
  %s5 = inlined_call_operand.vmem [shape: f32[6,128], index: 5, kind: output, shape index: {}]
  %s6 = sld [smem:[#allocation0]]
  $region30: #{segmentation_forward.2} parent=0
    _
  %s8 = ssub.s32 1, %s6
  %s9 = scalar_select 0, %s8, %s6
  // Predicated region
  $region2: #{segmentation_forward.2} parent=0 // pred_check
    _
  $region3: #{segmentation_forward.2} parent=0 // pred_check_branch
    %11 = sbr.rel (0) target = $region5
  $region4: #{segmentation_forward.2} parent=0 // pred_region
    _
  $region5: #{segmentation_forward.2} parent=0 // pred_fallthru
    _
  // Predicated region
  $region6: #{segmentation_forward.2} parent=0 // pred_check
    _
  $region7: #{segmentation_forward.2} parent=0 // pred_check_branch
    %13 = sbr.rel (0) target = $region9
  $region8: #{segmentation_forward.2} parent=0 // pred_region
    _
  $region9: #{segmentation_forward.2} parent=0 // pred_fallthru
    _
  // Predicated region
  $region10: #{segmentation_forward.2} parent=0 // pred_check
    _
  $region11: #{segmentation_forward.2} parent=0 // pred_check_branch
    %15 = sbr.rel (0) target = $region13
  $region12: #{segmentation_forward.2} parent=0 // pred_region
    _
  $region13: #{segmentation_forward.2} parent=0 // pred_fallthru
    _
  // Predicated region
  $region14: #{segmentation_forward.2} parent=0 // pred_check
    _
  $region15: #{segmentation_forward.2} parent=0 // pred_check_branch
    %17 = sbr.rel (0) target = $region17
  $region16: #{segmentation_forward.2} parent=0 // pred_region
    _
  $region17: #{segmentation_forward.2} parent=0 // pred_fallthru
    _
  // Predicated region
  $region18: #{segmentation_forward.2} parent=0 // pred_check
    _
  $region19: #{segmentation_forward.2} parent=0 // pred_check_branch
    %19 = sbr.rel (0) target = $region21
  $region20: #{segmentation_forward.2} parent=0 // pred_region
    _
  $region21: #{segmentation_forward.2} parent=0 // pred_fallthru
    _
  %v21 = vld [vmem:[%s1] sm:$0xf]
  %v22 = vld [vmem:[%s1 + $0x4] sm:$0xf]
  %v23 = vld [vmem:[%s1 + $0x8] sm:$0xf]
  %v24 = vld [vmem:[%s1 + $0xc] sm:$0xf]
  %v25 = vld [vmem:[%s0] sm:$0xf]
  %v26 = vld [vmem:[%s0 + $0x4] sm:$0xf]
  %v27 = vld [vmem:[%s0 + $0x8] sm:$0xf]
  %v28 = vld [vmem:[%s0 + $0xc] sm:$0xf]
  %v29 = vld [vmem:[%s0 + $0x10] sm:$0x3]
  %v30 = vld [vmem:[%s2] sm:$0xff]
  %v31 = vld [vmem:[%s2 + $0x8] sm:$0xff]
  %v32 = vld [vmem:[%s2 + $0x10] sm:$0xff]
  %v33 = vld [vmem:[%s2 + $0x18] sm:$0xff]
  %35 = vset.pattern.permute.xlu0 0
  %36 = vperm.xlu0 %35, %v30
  %v37 = vpop.permute.xlu0 %36
  %40 = vset.pattern.permute.xlu0 0
  %41 = vperm.xlu0 %40, %v31
  %v42 = vpop.permute.xlu0 %41
  %45 = vset.pattern.permute.xlu0 0
  %46 = vperm.xlu0 %45, %v32
  %v47 = vpop.permute.xlu0 %46
  %50 = vset.pattern.permute.xlu0 0
  %51 = vperm.xlu0 %50, %v33
  %v52 = vpop.permute.xlu0 %51
  %v58 = vunpack.c.l.b16 %v21
  %v59 = vunpack.c.l.b16 %v22
  %v60 = vunpack.c.l.b16 %v23
  %v61 = vunpack.c.l.b16 %v24
  %v62 = vpack.c.b16 %v59, %v58
  %v63 = vpack.c.b16 %v61, %v60
  %v69 = vunpack.c.l.b16 %v25
  %v70 = vunpack.c.l.b16 %v26
  %v71 = vunpack.c.l.b16 %v27
  %v72 = vunpack.c.l.b16 %v28
  %v73 = vunpack.c.l.b16 %v29
  %v74 = vpack.c.b16 %v70, %v69
  %v75 = vpack.c.b16 %v72, %v71
  %v76 = vpack.c.b16 %v73, %v73
  %vm79 = vcmask 293888
  %v81 = vsel %vm79, %v62, 0
  %v84 = vsel %vm79, %v63, 0
  %vm86 = vcmask 1041408
  %v88 = vsel %vm86, %v76, 0
  %90 = vmatpush.bf16.msra.mxu0 0
  %91 = vmatpush.bf16.msra.mxu0 0
  %92 = vmatpush.bf16.msra.mxu0 0
  %93 = vmatpush.bf16.msra.mxu0 0
  %94 = vmatpush.bf16.msra.mxu0 0
  %95 = vmatpush.bf16.msra.mxu0 %v88
  %96 = vmatpush.bf16.msra.mxu0 %v75
  %97 = vmatpush.bf16.msra.mxu0 %v74
  %98 = vmatmul.bf16.gmra.mxu0 %v81
  %v99 = vpop.f32.mrf.mxu0
  %v100 = vadd.f32 %v37, %v99
  %v101 = vpop.f32.mrf.mxu0
  %v102 = vadd.f32 %v42, %v101
  %103 = vmatmul.bf16.gmra.mxu0 %v84
  %v104 = vpop.f32.mrf.mxu0
  %v105 = vadd.f32 %v47, %v104
  %v106 = vpop.f32.mrf.mxu0
  %v107 = vadd.f32 %v52, %v106
  %108 = vdwg.mxu0
  %v109 = vmax.f32 %v100, 0.0
  %v110 = vmax.f32 %v102, 0.0
  %v111 = vmax.f32 %v105, 0.0
  %v112 = vmax.f32 %v107, 0.0
  %v113 = vld [vmem:[%s3] sm:$0x7]
  %v114 = vpack.c.bf16 %v110, %v109
  %v115 = vpack.c.bf16 %v112, %v111
  %v116 = vld [vmem:[%s4] sm:$0x3f]
  %118 = vset.pattern.permute.xlu0 0
  %119 = vperm.xlu0 %118, %v116
  %v120 = vpop.permute.xlu0 %119
  %vm122 = vcmask 261120
  %v124 = vsel %vm122, %v113, 0
  %126 = vmatpush.bf16.msra.mxu0 0
  %127 = vmatpush.bf16.msra.mxu0 0
  %128 = vmatpush.bf16.msra.mxu0 0
  %129 = vmatpush.bf16.msra.mxu0 0
  %130 = vmatpush.bf16.msra.mxu0 0
  %131 = vmatpush.bf16.msra.mxu0 0
  %132 = vmatpush.bf16.msra.mxu0 %v115
  %133 = vmatpush.bf16.msra.mxu0 %v114
  %134 = vmatmul.bf16.gmra.mxu0 %v124
  %v135 = vpop.f32.mrf.mxu0
  %v136 = vadd.f32 %v120, %v135
  %v137 = vpop.f32.mrf.mxu0
  %138 = vdwg.mxu0
  %139 = vst [vmem:[%s5] sm:$0x3f] %v136
  // Predicated region
  $region22: #{segmentation_forward.2} parent=0 // pred_check
    _
  $region23: #{segmentation_forward.2} parent=0 // pred_check_branch
    %141 = sbr.rel (0) target = $region25
  $region24: #{segmentation_forward.2} parent=0 // pred_region
    _
  $region25: #{segmentation_forward.2} parent=0 // pred_fallthru
    _
  // Predicated region
  $region26: #{segmentation_forward.2} parent=0 // pred_check
    _
  $region27: #{segmentation_forward.2} parent=0 // pred_check_branch
    %143 = sbr.rel (0) target = $region29
  $region28: #{segmentation_forward.2} parent=0 // pred_region
    _
  $region29: #{segmentation_forward.2} parent=0 // pred_fallthru
    _

</llo_original>
